<compile_context>
chip_gen: v7x
topology: tpu7x:2x2x1
jax: 0.10.0
libtpu: 0.0.40
codegen_flags: <defaults>
</compile_context>

<pallas_src>
import functools
import math

import jax
import jax.numpy as jnp
from jax.experimental import pallas as pl
from jax.experimental.pallas import tpu as pltpu
from jax.scipy.special import betaln, digamma

_EULER = 0.5772156649015329


# ----------------------------- Pallas kernel ------------------------------ #
def _fused_kuma_kernel(*refs, n_layers, hidden_act, final_act):
    """All Kumaraswamy-gated layers fused; intermediates never leave VMEM.

    refs = (x_ref, z0_ref, w0_ref, z1_ref, w1_ref, ..., o_ref)
      x_ref : (B, D0)       f32 flattened input
      zi_ref: (1, Di)       f32 Kumaraswamy gate sample for layer i
      wi_ref: (Di, Di+1)    f32 weight, stored (in, out) -> no wrapper transpose
      o_ref : (B, D_last)   f32 output (final activation applied in-kernel)
    """
    x_ref = refs[0]
    o_ref = refs[-1]
    layer_refs = refs[1:-1]

    h = x_ref[...]
    for i in range(n_layers):
        z = layer_refs[2 * i][...]        # (1, Di) gate
        w = layer_refs[2 * i + 1][...]    # (Di, Di+1) weight
        gated = h * z                     # VPU, f32 (keep gate in-kernel)
        # bf16 MXU operands, f32 accumulation.
        y = jnp.dot(gated.astype(jnp.bfloat16), w.astype(jnp.bfloat16),
                    preferred_element_type=jnp.float32)
        act = hidden_act if i < n_layers - 1 else final_act
        if act == "relu":
            y = jnp.maximum(y, 0.0)
        elif act == "tanh":
            y = jnp.tanh(y)
        elif act == "sigmoid":
            y = 1.0 / (1.0 + jnp.exp(-y))
        elif act == "softmax":
            m = jnp.max(y, axis=-1, keepdims=True)
            e = jnp.exp(y - m)
            denom = jnp.sum(e, axis=-1, keepdims=True)
            y = e * pl.reciprocal(denom, approx=True)   # divide -> EUP slot
        # "linear": identity
        h = y
    o_ref[...] = h.astype(o_ref.dtype)


def fused_kuma_forward(x, gates, weights, hidden_act, final_act):
    """x: (B, D0); gates[i]: (Di,); weights[i]: (Di, Di+1)  -> (B, D_last)."""
    B = x.shape[0]
    n_layers = len(weights)
    Dout = weights[-1].shape[1]

    flat_args = [x]
    for z, w in zip(gates, weights):
        flat_args.append(z.reshape(1, -1))
        flat_args.append(w)

    kernel = functools.partial(_fused_kuma_kernel, n_layers=n_layers,
                               hidden_act=hidden_act, final_act=final_act)
    # Everything (x + all weights + gates: ~150 KB at these sizes) is resident
    # in VMEM as whole-array blocks; no grid, no batch/lane padding needed.
    return pl.pallas_call(
        kernel,
        out_shape=jax.ShapeDtypeStruct((B, Dout), jnp.float32),
        in_specs=[pl.BlockSpec(memory_space=pltpu.MemorySpace.VMEM)
                  for _ in flat_args],
        out_specs=pl.BlockSpec(memory_space=pltpu.MemorySpace.VMEM),
    )(*flat_args)


# ------------------------------- KL (glue) -------------------------------- #
def kuma_kl(a, b, prior_alpha=1.0, prior_beta=1.0, n_terms=10):
    """Nalisnick & Smyth approximation of KL(Kumaraswamy(a,b) || Beta(alpha,beta)).

    TODO(synk): digamma/betaln have no Pallas TPU lowering; this tiny
    vector/scalar reduction stays in JAX glue. It is evaluated inside the
    single jitted forward so XLA fuses it into a couple of ops.
    """
    term = (a - prior_alpha) / a * (-_EULER - digamma(b) - 1.0 / b)
    term = term + jnp.log(a * b) + betaln(prior_alpha, prior_beta) - (b - 1.0) / b
    taylor = 0.0
    for m in range(1, n_terms + 1):
        taylor = taylor + 1.0 / (m + a * b) * jnp.exp(betaln(m / a, b))
    term = term + (prior_beta - 1.0) * b * taylor
    return jnp.sum(term)


# ------------------------------ Parameters -------------------------------- #
def init_params(key, input_size, layer_sizes, output_size):
    sizes = [input_size] + [int(s) for s in layer_sizes] + [int(output_size)]
    params = []
    for i in range(len(sizes) - 1):
        din, dout = sizes[i], sizes[i + 1]
        key, kw = jax.random.split(key)
        # Stored (in, out) so the hot path has no transpose.
        w = jax.random.normal(kw, (din, dout), jnp.float32) / jnp.sqrt(float(din))
        # Variational Kumaraswamy params (a, b via softplus), one gate per input unit.
        a_raw = jnp.full((din,), 1.5, jnp.float32)
        b_raw = jnp.full((din,), 1.5, jnp.float32)
        params.append({"w": w, "a_raw": a_raw, "b_raw": b_raw})
    return params


# ------------------------------- Forward ----------------------------------- #
@functools.partial(jax.jit, static_argnames=("activation", "task"))
def kumaraswamy_network_forward(params, x_nchw, key,
                                activation="relu", task="classification"):
    B = x_nchw.shape[0]
    Din = int(math.prod(x_nchw.shape[1:]))
    x = x_nchw.reshape(B, Din).astype(jnp.float32)   # == input.view(-1, input_size)

    gates, weights = [], []
    kl = jnp.zeros((), jnp.float32)
    keys = jax.random.split(key, len(params))
    for p, ku in zip(params, keys):
        a = jax.nn.softplus(p["a_raw"]) + 1e-6
        b = jax.nn.softplus(p["b_raw"]) + 1e-6
        u = jax.random.uniform(ku, a.shape, jnp.float32, 1e-6, 1.0 - 1e-6)
        # Kumaraswamy inverse-CDF sample (gate per input unit).
        z = (1.0 - (1.0 - u) ** (1.0 / b)) ** (1.0 / a)
        gates.append(z)
        weights.append(p["w"])
        kl = kl + kuma_kl(a, b)

    final_act = {"classification": "softmax",
                 "binary_classification": "sigmoid"}.get(task, "linear")
    out = fused_kuma_forward(x, gates, weights, activation, final_act)
    return out, kl.reshape(1)


# --------------------------------- Main ------------------------------------ #
if __name__ == "__main__":
    key = jax.random.PRNGKey(0)
    k_in, k_par, k_noise = jax.random.split(key, 3)

    # Module config: input_size=(4,16,16) -> 1024, layers=[32,32], output=8,
    # activation='relu', args.task='classification'
    x = jax.random.normal(k_in, (2, 4, 16, 16), jnp.float32)
    params = init_params(k_par, input_size=4 * 16 * 16,
                         layer_sizes=[32, 32], output_size=8)

    out, kl = kumaraswamy_network_forward(params, x, k_noise,
                                          activation="relu",
                                          task="classification")
    out = jax.block_until_ready(out)
    kl = jax.block_until_ready(kl)

    assert out.shape == (2, 8) and kl.shape == (1,)
    assert bool(jnp.all(jnp.isfinite(out))) and bool(jnp.isfinite(kl[0]))
    # softmax rows sum to ~1 (approx reciprocal -> loose tolerance)
    assert bool(jnp.allclose(jnp.sum(out, axis=-1), 1.0, atol=5e-3))
    print("KERNEL_OK")
</pallas_src>

<mosaic_0001>
module attributes {stable_mosaic.version = 11 : i64} {
  func.func @_fused_kuma_kernel(%arg0: memref<2x1024xf32, #tpu.memory_space<vmem>>, %arg1: memref<1x1024xf32, #tpu.memory_space<vmem>>, %arg2: memref<1024x32xf32, #tpu.memory_space<vmem>>, %arg3: memref<1x32xf32, #tpu.memory_space<vmem>>, %arg4: memref<32x32xf32, #tpu.memory_space<vmem>>, %arg5: memref<1x32xf32, #tpu.memory_space<vmem>>, %arg6: memref<32x8xf32, #tpu.memory_space<vmem>>, %arg7: memref<2x8xf32, #tpu.memory_space<vmem>>) attributes {dimension_semantics = [], scalar_prefetch = 0 : i64, scratch_operands = 0 : i64, tpu.core_type = #tpu.core_type<tc>} {
    %c0 = arith.constant 0 : index
    %c0_0 = arith.constant 0 : index
    %0 = vector.load %arg0[%c0, %c0_0] : memref<2x1024xf32, #tpu.memory_space<vmem>>, vector<2x1024xf32>
    %c0_1 = arith.constant 0 : index
    %c0_2 = arith.constant 0 : index
    %1 = vector.load %arg1[%c0_1, %c0_2] : memref<1x1024xf32, #tpu.memory_space<vmem>>, vector<1x1024xf32>
    %c0_3 = arith.constant 0 : index
    %c0_4 = arith.constant 0 : index
    %2 = vector.load %arg2[%c0_3, %c0_4] : memref<1024x32xf32, #tpu.memory_space<vmem>>, vector<1024x32xf32>
    %3 = vector.broadcast %1 : vector<1x1024xf32> to vector<2x1024xf32>
    %4 = arith.mulf %0, %3 : vector<2x1024xf32>
    %5 = arith.truncf %4 : vector<2x1024xf32> to vector<2x1024xbf16>
    %6 = arith.truncf %2 : vector<1024x32xf32> to vector<1024x32xbf16>
    %cst = arith.constant dense<0.000000e+00> : vector<2x32xf32>
    %7 = tpu.matmul %5, %6, %cst {dimension_numbers = #tpu.dot_dimension_numbers<[1], [0], [0], [1], [0, 0, 1, 1], [], []>} : vector<2x1024xbf16>, vector<1024x32xbf16>, vector<2x32xf32> -> vector<2x32xf32>
    %cst_5 = arith.constant 0.000000e+00 : f32
    %8 = vector.broadcast %cst_5 : f32 to vector<2x32xf32>
    %9 = arith.maximumf %7, %8 : vector<2x32xf32>
    %c0_6 = arith.constant 0 : index
    %c0_7 = arith.constant 0 : index
    %10 = vector.load %arg3[%c0_6, %c0_7] : memref<1x32xf32, #tpu.memory_space<vmem>>, vector<1x32xf32>
    %c0_8 = arith.constant 0 : index
    %c0_9 = arith.constant 0 : index
    %11 = vector.load %arg4[%c0_8, %c0_9] : memref<32x32xf32, #tpu.memory_space<vmem>>, vector<32x32xf32>
    %12 = vector.broadcast %10 : vector<1x32xf32> to vector<2x32xf32>
    %13 = arith.mulf %9, %12 : vector<2x32xf32>
    %14 = arith.truncf %13 : vector<2x32xf32> to vector<2x32xbf16>
    %15 = arith.truncf %11 : vector<32x32xf32> to vector<32x32xbf16>
    %cst_10 = arith.constant dense<0.000000e+00> : vector<2x32xf32>
    %16 = tpu.matmul %14, %15, %cst_10 {dimension_numbers = #tpu.dot_dimension_numbers<[1], [0], [0], [1], [0, 0, 1, 1], [], []>} : vector<2x32xbf16>, vector<32x32xbf16>, vector<2x32xf32> -> vector<2x32xf32>
    %cst_11 = arith.constant 0.000000e+00 : f32
    %17 = vector.broadcast %cst_11 : f32 to vector<2x32xf32>
    %18 = arith.maximumf %16, %17 : vector<2x32xf32>
    %c0_12 = arith.constant 0 : index
    %c0_13 = arith.constant 0 : index
    %19 = vector.load %arg5[%c0_12, %c0_13] : memref<1x32xf32, #tpu.memory_space<vmem>>, vector<1x32xf32>
    %c0_14 = arith.constant 0 : index
    %c0_15 = arith.constant 0 : index
    %20 = vector.load %arg6[%c0_14, %c0_15] : memref<32x8xf32, #tpu.memory_space<vmem>>, vector<32x8xf32>
    %21 = vector.broadcast %19 : vector<1x32xf32> to vector<2x32xf32>
    %22 = arith.mulf %18, %21 : vector<2x32xf32>
    %23 = arith.truncf %22 : vector<2x32xf32> to vector<2x32xbf16>
    %24 = arith.truncf %20 : vector<32x8xf32> to vector<32x8xbf16>
    %cst_16 = arith.constant dense<0.000000e+00> : vector<2x8xf32>
    %25 = tpu.matmul %23, %24, %cst_16 {dimension_numbers = #tpu.dot_dimension_numbers<[1], [0], [0], [1], [0, 0, 1, 1], [], []>} : vector<2x32xbf16>, vector<32x8xbf16>, vector<2x8xf32> -> vector<2x8xf32>
    %cst_17 = arith.constant dense<0xFF800000> : vector<2xf32>
    %26 = vector.multi_reduction <maximumf>, %25, %cst_17 [1] : vector<2x8xf32> to vector<2xf32>
    %27 = vector.shape_cast %26 : vector<2xf32> to vector<2x1xf32>
    %28 = vector.broadcast %27 : vector<2x1xf32> to vector<2x8xf32>
    %29 = arith.subf %25, %28 : vector<2x8xf32>
    %30 = math.exp %29 : vector<2x8xf32>
    %cst_18 = arith.constant dense<0.000000e+00> : vector<2xf32>
    %31 = vector.multi_reduction <add>, %30, %cst_18 [1] : vector<2x8xf32> to vector<2xf32>
    %32 = vector.shape_cast %31 : vector<2xf32> to vector<2x1xf32>
    %33 = tpu.reciprocal %32 {approx = true} : vector<2x1xf32> -> vector<2x1xf32>
    %34 = vector.broadcast %33 : vector<2x1xf32> to vector<2x8xf32>
    %35 = arith.mulf %30, %34 : vector<2x8xf32>
    %c0_19 = arith.constant 0 : index
    %c0_20 = arith.constant 0 : index
    %36 = vector.load %arg7[%c0_19, %c0_20] : memref<2x8xf32, #tpu.memory_space<vmem>>, vector<2x8xf32>
    tpu.vector_store %arg7[%c0_19, %c0_20], %35 {strides = array<i32>} : memref<2x8xf32, #tpu.memory_space<vmem>>, vector<2x8xf32>,
    return
  }
}

</mosaic_0001>

<llo_original>
// kernel: kumaraswamy_network_forward.3
$region0: #{kumaraswamy_network_forward.3}
  #allocation0 [shape = 'u32[]', space=smem, size = 0x4, offset = 0x4, fixed_abs, tag = 'smem constant byte address 0x4 - core index']
  #allocation1 [shape = 'u32[144,128]{1,0:T(1,128)}', space=vmem, size = 0x12000, scoped, tag = 'internal scratch']
  %s0 = inlined_call_operand.vmem [shape: f32[2,1024], index: 0, kind: input, shape index: {}]
  %s1 = inlined_call_operand.vmem [shape: f32[1,1024], index: 1, kind: input, shape index: {}]
  %s2 = inlined_call_operand.vmem [shape: f32[1024,32], index: 2, kind: input, shape index: {}]
  %s3 = inlined_call_operand.vmem [shape: f32[1,32], index: 3, kind: input, shape index: {}]
  %s4 = inlined_call_operand.vmem [shape: f32[32,32], index: 4, kind: input, shape index: {}]
  %s5 = inlined_call_operand.vmem [shape: f32[1,32], index: 5, kind: input, shape index: {}]
  %s6 = inlined_call_operand.vmem [shape: f32[32,8], index: 6, kind: input, shape index: {}]
  %s7 = inlined_call_operand.hbm [shape: f32[2,8], index: 7, kind: output, shape index: {}]
  %s8 = sld [smem:[#allocation0]]
  $region38: #{kumaraswamy_network_forward.3} parent=0
    _
  %s10 = ssub.s32 1, %s8
  %s11 = scalar_select 0, %s10, %s8
  $region1: #{kumaraswamy_network_forward.3} parent=0
    #allocation2 [shape = 'u8[1024]{0}', space=vmem, size = 0x400, scoped, tag = 'output window, operand 0, single buffered']
    #allocation3 [shape = 's32[1]{0}', space=sflag, size = 0x4, scoped, tag = 'scoped memory for kumaraswamy_network_forward.3']
    %12 = vsyncpa [#allocation3], 0
    // Predicated region
    $region2: #{kumaraswamy_network_forward.3} parent=1 // pred_check
      _
    $region3: #{kumaraswamy_network_forward.3} parent=1 // pred_check_branch
      %14 = sbr.rel (0) target = $region5
    $region4: #{kumaraswamy_network_forward.3} parent=1 // pred_region
      _
    $region5: #{kumaraswamy_network_forward.3} parent=1 // pred_fallthru
      _
    // Predicated region
    $region6: #{kumaraswamy_network_forward.3} parent=1 // pred_check
      _
    $region7: #{kumaraswamy_network_forward.3} parent=1 // pred_check_branch
      %16 = sbr.rel (0) target = $region9
    $region8: #{kumaraswamy_network_forward.3} parent=1 // pred_region
      _
    $region9: #{kumaraswamy_network_forward.3} parent=1 // pred_fallthru
      _
    // Predicated region
    $region10: #{kumaraswamy_network_forward.3} parent=1 // pred_check
      _
    $region11: #{kumaraswamy_network_forward.3} parent=1 // pred_check_branch
      %18 = sbr.rel (0) target = $region13
    $region12: #{kumaraswamy_network_forward.3} parent=1 // pred_region
      _
    $region13: #{kumaraswamy_network_forward.3} parent=1 // pred_fallthru
      _
    // Predicated region
    $region14: #{kumaraswamy_network_forward.3} parent=1 // pred_check
      _
    $region15: #{kumaraswamy_network_forward.3} parent=1 // pred_check_branch
      %20 = sbr.rel (0) target = $region17
    $region16: #{kumaraswamy_network_forward.3} parent=1 // pred_region
      _
    $region17: #{kumaraswamy_network_forward.3} parent=1 // pred_fallthru
      _
    // Predicated region
    $region18: #{kumaraswamy_network_forward.3} parent=1 // pred_check
      _
    $region19: #{kumaraswamy_network_forward.3} parent=1 // pred_check_branch
      %22 = sbr.rel (0) target = $region21
    $region20: #{kumaraswamy_network_forward.3} parent=1 // pred_region
      _
    $region21: #{kumaraswamy_network_forward.3} parent=1 // pred_fallthru
      _
    // Predicated region
    $region22: #{kumaraswamy_network_forward.3} parent=1 // pred_check
      _
    $region23: #{kumaraswamy_network_forward.3} parent=1 // pred_check_branch
      %24 = sbr.rel (0) target = $region25
    $region24: #{kumaraswamy_network_forward.3} parent=1 // pred_region
      _
    $region25: #{kumaraswamy_network_forward.3} parent=1 // pred_fallthru
      _
    // Predicated region
    $region26: #{kumaraswamy_network_forward.3} parent=1 // pred_check
      _
    $region27: #{kumaraswamy_network_forward.3} parent=1 // pred_check_branch
      %26 = sbr.rel (0) target = $region29
    $region28: #{kumaraswamy_network_forward.3} parent=1 // pred_region
      _
    $region29: #{kumaraswamy_network_forward.3} parent=1 // pred_fallthru
      _
    %v28 = vld [vmem:[%s0] sm:$0xff]
    %v29 = vld [vmem:[%s0 + $0x8] sm:$0xff]
    %v30 = vld [vmem:[%s1] sm:$0xff]
    %v31 = vld [vmem:[%s2] sm:$0xff]
    %v32 = vld [vmem:[%s2 + $0x8] sm:$0xff]
    %v33 = vld [vmem:[%s2 + $0x10] sm:$0xff]
    %v34 = vld [vmem:[%s2 + $0x18] sm:$0xff]
    %v35 = vld [vmem:[%s2 + $0x20] sm:$0xff]
    %v36 = vld [vmem:[%s2 + $0x28] sm:$0xff]
    %v37 = vld [vmem:[%s2 + $0x30] sm:$0xff]
    %v38 = vld [vmem:[%s2 + $0x38] sm:$0xff]
    %v39 = vld [vmem:[%s2 + $0x40] sm:$0xff]
    %v40 = vld [vmem:[%s2 + $0x48] sm:$0xff]
    %v41 = vld [vmem:[%s2 + $0x50] sm:$0xff]
    %v42 = vld [vmem:[%s2 + $0x58] sm:$0xff]
    %v43 = vld [vmem:[%s2 + $0x60] sm:$0xff]
    %v44 = vld [vmem:[%s2 + $0x68] sm:$0xff]
    %v45 = vld [vmem:[%s2 + $0x70] sm:$0xff]
    %v46 = vld [vmem:[%s2 + $0x78] sm:$0xff]
    %v47 = vld [vmem:[%s2 + $0x80] sm:$0xff]
    %v48 = vld [vmem:[%s2 + $0x88] sm:$0xff]
    %v49 = vld [vmem:[%s2 + $0x90] sm:$0xff]
    %v50 = vld [vmem:[%s2 + $0x98] sm:$0xff]
    %v51 = vld [vmem:[%s2 + $0xa0] sm:$0xff]
    %v52 = vld [vmem:[%s2 + $0xa8] sm:$0xff]
    %v53 = vld [vmem:[%s2 + $0xb0] sm:$0xff]
    %v54 = vld [vmem:[%s2 + $0xb8] sm:$0xff]
    %v55 = vld [vmem:[%s2 + $0xc0] sm:$0xff]
    %v56 = vld [vmem:[%s2 + $0xc8] sm:$0xff]
    %v57 = vld [vmem:[%s2 + $0xd0] sm:$0xff]
    %v58 = vld [vmem:[%s2 + $0xd8] sm:$0xff]
    %v59 = vld [vmem:[%s2 + $0xe0] sm:$0xff]
    %v60 = vld [vmem:[%s2 + $0xe8] sm:$0xff]
    %v61 = vld [vmem:[%s2 + $0xf0] sm:$0xff]
    %v62 = vld [vmem:[%s2 + $0xf8] sm:$0xff]
    %v63 = vld [vmem:[%s2 + $0x100] sm:$0xff]
    %v64 = vld [vmem:[%s2 + $0x108] sm:$0xff]
    %v65 = vld [vmem:[%s2 + $0x110] sm:$0xff]
    %v66 = vld [vmem:[%s2 + $0x118] sm:$0xff]
    %v67 = vld [vmem:[%s2 + $0x120] sm:$0xff]
    %v68 = vld [vmem:[%s2 + $0x128] sm:$0xff]
    %v69 = vld [vmem:[%s2 + $0x130] sm:$0xff]
    %v70 = vld [vmem:[%s2 + $0x138] sm:$0xff]
    %v71 = vld [vmem:[%s2 + $0x140] sm:$0xff]
    %v72 = vld [vmem:[%s2 + $0x148] sm:$0xff]
    %v73 = vld [vmem:[%s2 + $0x150] sm:$0xff]
    %v74 = vld [vmem:[%s2 + $0x158] sm:$0xff]
    %v75 = vld [vmem:[%s2 + $0x160] sm:$0xff]
    %v76 = vld [vmem:[%s2 + $0x168] sm:$0xff]
    %v77 = vld [vmem:[%s2 + $0x170] sm:$0xff]
    %v78 = vld [vmem:[%s2 + $0x178] sm:$0xff]
    %v79 = vld [vmem:[%s2 + $0x180] sm:$0xff]
    %v80 = vld [vmem:[%s2 + $0x188] sm:$0xff]
    %v81 = vld [vmem:[%s2 + $0x190] sm:$0xff]
    %v82 = vld [vmem:[%s2 + $0x198] sm:$0xff]
    %v83 = vld [vmem:[%s2 + $0x1a0] sm:$0xff]
    %v84 = vld [vmem:[%s2 + $0x1a8] sm:$0xff]
    %v85 = vld [vmem:[%s2 + $0x1b0] sm:$0xff]
    %v86 = vld [vmem:[%s2 + $0x1b8] sm:$0xff]
    %v87 = vld [vmem:[%s2 + $0x1c0] sm:$0xff]
    %v88 = vld [vmem:[%s2 + $0x1c8] sm:$0xff]
    %v89 = vld [vmem:[%s2 + $0x1d0] sm:$0xff]
    %v90 = vld [vmem:[%s2 + $0x1d8] sm:$0xff]
    %v91 = vld [vmem:[%s2 + $0x1e0] sm:$0xff]
    %v92 = vld [vmem:[%s2 + $0x1e8] sm:$0xff]
    %v93 = vld [vmem:[%s2 + $0x1f0] sm:$0xff]
    %v94 = vld [vmem:[%s2 + $0x1f8] sm:$0xff]
    %v95 = vld [vmem:[%s2 + $0x200] sm:$0xff]
    %v96 = vld [vmem:[%s2 + $0x208] sm:$0xff]
    %v97 = vld [vmem:[%s2 + $0x210] sm:$0xff]
    %v98 = vld [vmem:[%s2 + $0x218] sm:$0xff]
    %v99 = vld [vmem:[%s2 + $0x220] sm:$0xff]
    %v100 = vld [vmem:[%s2 + $0x228] sm:$0xff]
    %v101 = vld [vmem:[%s2 + $0x230] sm:$0xff]
    %v102 = vld [vmem:[%s2 + $0x238] sm:$0xff]
    %v103 = vld [vmem:[%s2 + $0x240] sm:$0xff]
    %v104 = vld [vmem:[%s2 + $0x248] sm:$0xff]
    %v105 = vld [vmem:[%s2 + $0x250] sm:$0xff]
    %v106 = vld [vmem:[%s2 + $0x258] sm:$0xff]
    %v107 = vld [vmem:[%s2 + $0x260] sm:$0xff]
    %v108 = vld [vmem:[%s2 + $0x268] sm:$0xff]
    %v109 = vld [vmem:[%s2 + $0x270] sm:$0xff]
    %v110 = vld [vmem:[%s2 + $0x278] sm:$0xff]
    %v111 = vld [vmem:[%s2 + $0x280] sm:$0xff]
    %v112 = vld [vmem:[%s2 + $0x288] sm:$0xff]
    %v113 = vld [vmem:[%s2 + $0x290] sm:$0xff]
    %v114 = vld [vmem:[%s2 + $0x298] sm:$0xff]
    %v115 = vld [vmem:[%s2 + $0x2a0] sm:$0xff]
    %v116 = vld [vmem:[%s2 + $0x2a8] sm:$0xff]
    %v117 = vld [vmem:[%s2 + $0x2b0] sm:$0xff]
    %v118 = vld [vmem:[%s2 + $0x2b8] sm:$0xff]
    %v119 = vld [vmem:[%s2 + $0x2c0] sm:$0xff]
    %v120 = vld [vmem:[%s2 + $0x2c8] sm:$0xff]
    %v121 = vld [vmem:[%s2 + $0x2d0] sm:$0xff]
    %v122 = vld [vmem:[%s2 + $0x2d8] sm:$0xff]
    %v123 = vld [vmem:[%s2 + $0x2e0] sm:$0xff]
    %v124 = vld [vmem:[%s2 + $0x2e8] sm:$0xff]
    %v125 = vld [vmem:[%s2 + $0x2f0] sm:$0xff]
    %v126 = vld [vmem:[%s2 + $0x2f8] sm:$0xff]
    %v127 = vld [vmem:[%s2 + $0x300] sm:$0xff]
    %v128 = vld [vmem:[%s2 + $0x308] sm:$0xff]
    %v129 = vld [vmem:[%s2 + $0x310] sm:$0xff]
    %v130 = vld [vmem:[%s2 + $0x318] sm:$0xff]
    %v131 = vld [vmem:[%s2 + $0x320] sm:$0xff]
    %v132 = vld [vmem:[%s2 + $0x328] sm:$0xff]
    %v133 = vld [vmem:[%s2 + $0x330] sm:$0xff]
    %v134 = vld [vmem:[%s2 + $0x338] sm:$0xff]
    %v135 = vld [vmem:[%s2 + $0x340] sm:$0xff]
    %v136 = vld [vmem:[%s2 + $0x348] sm:$0xff]
    %v137 = vld [vmem:[%s2 + $0x350] sm:$0xff]
    %v138 = vld [vmem:[%s2 + $0x358] sm:$0xff]
    %v139 = vld [vmem:[%s2 + $0x360] sm:$0xff]
    %v140 = vld [vmem:[%s2 + $0x368] sm:$0xff]
    %v141 = vld [vmem:[%s2 + $0x370] sm:$0xff]
    %v142 = vld [vmem:[%s2 + $0x378] sm:$0xff]
    %v143 = vld [vmem:[%s2 + $0x380] sm:$0xff]
    %v144 = vld [vmem:[%s2 + $0x388] sm:$0xff]
    %v145 = vld [vmem:[%s2 + $0x390] sm:$0xff]
    %v146 = vld [vmem:[%s2 + $0x398] sm:$0xff]
    %v147 = vld [vmem:[%s2 + $0x3a0] sm:$0xff]
    %v148 = vld [vmem:[%s2 + $0x3a8] sm:$0xff]
    %v149 = vld [vmem:[%s2 + $0x3b0] sm:$0xff]
    %v150 = vld [vmem:[%s2 + $0x3b8] sm:$0xff]
    %v151 = vld [vmem:[%s2 + $0x3c0] sm:$0xff]
    %v152 = vld [vmem:[%s2 + $0x3c8] sm:$0xff]
    %v153 = vld [vmem:[%s2 + $0x3d0] sm:$0xff]
    %v154 = vld [vmem:[%s2 + $0x3d8] sm:$0xff]
    %v155 = vld [vmem:[%s2 + $0x3e0] sm:$0xff]
    %v156 = vld [vmem:[%s2 + $0x3e8] sm:$0xff]
    %v157 = vld [vmem:[%s2 + $0x3f0] sm:$0xff]
    %v158 = vld [vmem:[%s2 + $0x3f8] sm:$0xff]
    %v160 = vlaneseq
    %v161 = vshrl.u32 %v160, 7
    %v162 = vsub.s32 0, %v161
    %v163 = vrot.slane %v30, %v162
    %v164 = vlaneseq
    %v165 = vshrl.u32 %v164, 7
    %v166 = vsub.s32 1, %v165
    %v167 = vrot.slane %v30, %v166
    %v168 = vlaneseq
    %v169 = vshrl.u32 %v168, 7
    %v170 = vsub.s32 2, %v169
    %v171 = vrot.slane %v30, %v170
    %v172 = vlaneseq
    %v173 = vshrl.u32 %v172, 7
    %v174 = vsub.s32 3, %v173
    %v175 = vrot.slane %v30, %v174
    %v176 = vlaneseq
    %v177 = vshrl.u32 %v176, 7
    %v178 = vsub.s32 4, %v177
    %v179 = vrot.slane %v30, %v178
    %v180 = vlaneseq
    %v181 = vshrl.u32 %v180, 7
    %v182 = vsub.s32 5, %v181
    %v183 = vrot.slane %v30, %v182
    %v184 = vlaneseq
    %v185 = vshrl.u32 %v184, 7
    %v186 = vsub.s32 6, %v185
    %v187 = vrot.slane %v30, %v186
    %v188 = vlaneseq
    %v189 = vshrl.u32 %v188, 7
    %v190 = vsub.s32 7, %v189
    %v191 = vrot.slane %v30, %v190
    %v192 = vcombine.low %v163, %v167
    %v193 = vcombine.low %v171, %v175
    %v195 = vunpack.c.l.s4 1983009808
    %v196 = vunpack.c.0.s8 %v195
    %v197 = vlaneseq
    %v198 = vshrl.u32 %v197, 7
    %v199 = vsub.s32 %v196, %v198
    %v200 = vrot.slane %v192, %v199
    %v202 = vunpack.c.l.s4 1983009808
    %v203 = vunpack.c.0.s8 %v202
    %v204 = vlaneseq
    %v205 = vshrl.u32 %v204, 7
    %v206 = vsub.s32 %v203, %v205
    %v207 = vrot.slane %v193, %v206
    %v208 = vcombine.low %v200, %v207
    %v209 = vcombine.low %v179, %v183
    %v210 = vcombine.low %v187, %v191
    %v212 = vunpack.c.l.s4 1983009808
    %v213 = vunpack.c.0.s8 %v212
    %v214 = vlaneseq
    %v215 = vshrl.u32 %v214, 7
    %v216 = vsub.s32 %v213, %v215
    %v217 = vrot.slane %v209, %v216
    %v219 = vunpack.c.l.s4 1983009808
    %v220 = vunpack.c.0.s8 %v219
    %v221 = vlaneseq
    %v222 = vshrl.u32 %v221, 7
    %v223 = vsub.s32 %v220, %v222
    %v224 = vrot.slane %v210, %v223
    %v225 = vcombine.low %v217, %v224
    %v228 = vmul.f32 %v28, %v208
    %v229 = vmul.f32 %v29, %v225
    %v232 = vcombine.high %v228, %v228
    %v234 = vunpack.c.l.s4 1983009808
    %v235 = vunpack.c.0.s8 %v234
    %v236 = vlaneseq
    %v237 = vshrl.u32 %v236, 7
    %v238 = vsub.s32 %v235, %v237
    %v239 = vrot.slane %v228, %v238
    %v241 = vunpack.c.l.s4 1983009808
    %v242 = vunpack.c.0.s8 %v241
    %v243 = vlaneseq
    %v244 = vshrl.u32 %v243, 7
    %v245 = vsub.s32 %v242, %v244
    %v246 = vrot.slane %v232, %v245
    %v247 = vcombine.high %v239, %v239
    %v248 = vcombine.high %v246, %v246
    %v249 = vcombine.high %v229, %v229
    %v251 = vunpack.c.l.s4 1983009808
    %v252 = vunpack.c.0.s8 %v251
    %v253 = vlaneseq
    %v254 = vshrl.u32 %v253, 7
    %v255 = vsub.s32 %v252, %v254
    %v256 = vrot.slane %v229, %v255
    %v258 = vunpack.c.l.s4 1983009808
    %v259 = vunpack.c.0.s8 %v258
    %v260 = vlaneseq
    %v261 = vshrl.u32 %v260, 7
    %v262 = vsub.s32 %v259, %v261
    %v263 = vrot.slane %v249, %v262
    %v264 = vcombine.high %v256, %v256
    %v265 = vcombine.high %v263, %v263
    %v274 = vpack.c.bf16 %v239, %v239
    %v275 = vpack.c.bf16 %v247, %v247
    %v276 = vpack.c.bf16 %v246, %v246
    %v277 = vpack.c.bf16 %v248, %v248
    %v278 = vpack.c.bf16 %v256, %v256
    %v279 = vpack.c.bf16 %v264, %v264
    %v280 = vpack.c.bf16 %v263, %v263
    %v281 = vpack.c.bf16 %v265, %v265
    %v282 = vpack.c.bf16 %v32, %v31
    %v283 = vpack.c.bf16 %v34, %v33
    %v284 = vpack.c.bf16 %v36, %v35
    %v285 = vpack.c.bf16 %v38, %v37
    %v286 = vpack.c.bf16 %v40, %v39
    %v287 = vpack.c.bf16 %v42, %v41
    %v288 = vpack.c.bf16 %v44, %v43
    %v289 = vpack.c.bf16 %v46, %v45
    %v290 = vpack.c.bf16 %v48, %v47
    %v291 = vpack.c.bf16 %v50, %v49
    %v292 = vpack.c.bf16 %v52, %v51
    %v293 = vpack.c.bf16 %v54, %v53
    %v294 = vpack.c.bf16 %v56, %v55
    %v295 = vpack.c.bf16 %v58, %v57
    %v296 = vpack.c.bf16 %v60, %v59
    %v297 = vpack.c.bf16 %v62, %v61
    %v298 = vpack.c.bf16 %v64, %v63
    %v299 = vpack.c.bf16 %v66, %v65
    %v300 = vpack.c.bf16 %v68, %v67
    %v301 = vpack.c.bf16 %v70, %v69
    %v302 = vpack.c.bf16 %v72, %v71
    %v303 = vpack.c.bf16 %v74, %v73
    %v304 = vpack.c.bf16 %v76, %v75
    %v305 = vpack.c.bf16 %v78, %v77
    %v306 = vpack.c.bf16 %v80, %v79
    %v307 = vpack.c.bf16 %v82, %v81
    %v308 = vpack.c.bf16 %v84, %v83
    %v309 = vpack.c.bf16 %v86, %v85
    %v310 = vpack.c.bf16 %v88, %v87
    %v311 = vpack.c.bf16 %v90, %v89
    %v312 = vpack.c.bf16 %v92, %v91
    %v313 = vpack.c.bf16 %v94, %v93
    %v314 = vpack.c.bf16 %v96, %v95
    %v315 = vpack.c.bf16 %v98, %v97
    %v316 = vpack.c.bf16 %v100, %v99
    %v317 = vpack.c.bf16 %v102, %v101
    %v318 = vpack.c.bf16 %v104, %v103
    %v319 = vpack.c.bf16 %v106, %v105
    %v320 = vpack.c.bf16 %v108, %v107
    %v321 = vpack.c.bf16 %v110, %v109
    %v322 = vpack.c.bf16 %v112, %v111
    %v323 = vpack.c.bf16 %v114, %v113
    %v324 = vpack.c.bf16 %v116, %v115
    %v325 = vpack.c.bf16 %v118, %v117
    %v326 = vpack.c.bf16 %v120, %v119
    %v327 = vpack.c.bf16 %v122, %v121
    %v328 = vpack.c.bf16 %v124, %v123
    %v329 = vpack.c.bf16 %v126, %v125
    %v330 = vpack.c.bf16 %v128, %v127
    %v331 = vpack.c.bf16 %v130, %v129
    %v332 = vpack.c.bf16 %v132, %v131
    %v333 = vpack.c.bf16 %v134, %v133
    %v334 = vpack.c.bf16 %v136, %v135
    %v335 = vpack.c.bf16 %v138, %v137
    %v336 = vpack.c.bf16 %v140, %v139
    %v337 = vpack.c.bf16 %v142, %v141
    %v338 = vpack.c.bf16 %v144, %v143
    %v339 = vpack.c.bf16 %v146, %v145
    %v340 = vpack.c.bf16 %v148, %v147
    %v341 = vpack.c.bf16 %v150, %v149
    %v342 = vpack.c.bf16 %v152, %v151
    %v343 = vpack.c.bf16 %v154, %v153
    %v344 = vpack.c.bf16 %v156, %v155
    %v345 = vpack.c.bf16 %v158, %v157
    %346 = vmatprep.subr.bf16.mxu0 0
    %347 = vmatpush1.bf16.msra.mxu0 %v282
    %348 = vmatprep.subr.bf16.mxu0 0
    %349 = vmatpush1.bf16.msra.mxu0 %v283
    %350 = vmatprep.subr.bf16.mxu0 0
    %351 = vmatpush1.bf16.msra.mxu0 %v284
    %352 = vmatprep.subr.bf16.mxu0 0
    %353 = vmatpush1.bf16.msra.mxu0 %v285
    %354 = vmatprep.subr.bf16.mxu0 0
    %355 = vmatpush1.bf16.msra.mxu0 %v286
    %356 = vmatprep.subr.bf16.mxu0 0
    %357 = vmatpush1.bf16.msra.mxu0 %v287
    %358 = vmatprep.subr.bf16.mxu0 0
    %359 = vmatpush1.bf16.msra.mxu0 %v288
    %360 = vmatprep.subr.bf16.mxu0 0
    %361 = vmatpush1.bf16.msra.mxu0 %v289
    %362 = vmatprep.subr.bf16.mxu0 0
    %363 = vmatpush1.bf16.msra.mxu0 %v290
    %364 = vmatprep.subr.bf16.mxu0 0
    %365 = vmatpush1.bf16.msra.mxu0 %v291
    %366 = vmatprep.subr.bf16.mxu0 0
    %367 = vmatpush1.bf16.msra.mxu0 %v292
    %368 = vmatprep.subr.bf16.mxu0 0
    %369 = vmatpush1.bf16.msra.mxu0 %v293
    %370 = vmatprep.subr.bf16.mxu0 0
    %371 = vmatpush1.bf16.msra.mxu0 %v294
    %372 = vmatprep.subr.bf16.mxu0 0
    %373 = vmatpush1.bf16.msra.mxu0 %v295
    %374 = vmatprep.subr.bf16.mxu0 0
    %375 = vmatpush1.bf16.msra.mxu0 %v296
    %376 = vmatprep.subr.bf16.mxu0 0
    %377 = vmatpush1.bf16.msra.mxu0 %v297
    %378 = vmatprep.mubr.bf16.mxu0 %v275
    %379 = vmatmul.mubr.bf16.gmra.mrb[0].mxu0 %v274
    %v380 = vpop.f32.mrb[0].mxu0
    %v381 = vadd.f32 0.0, %v380
    %v382 = vpop.f32.mrb[0].mxu0
    %v383 = vpop.f32.mrb[0].mxu0
    %v384 = vpop.f32.mrb[0].mxu0
    %385 = vdwg.mxu0
    %386 = vmatprep.subr.bf16.mxu0 0
    %387 = vmatpush1.bf16.msra.mxu0 %v298
    %388 = vmatprep.subr.bf16.mxu0 0
    %389 = vmatpush1.bf16.msra.mxu0 %v299
    %390 = vmatprep.subr.bf16.mxu0 0
    %391 = vmatpush1.bf16.msra.mxu0 %v300
    %392 = vmatprep.subr.bf16.mxu0 0
    %393 = vmatpush1.bf16.msra.mxu0 %v301
    %394 = vmatprep.subr.bf16.mxu0 0
    %395 = vmatpush1.bf16.msra.mxu0 %v302
    %396 = vmatprep.subr.bf16.mxu0 0
    %397 = vmatpush1.bf16.msra.mxu0 %v303
    %398 = vmatprep.subr.bf16.mxu0 0
    %399 = vmatpush1.bf16.msra.mxu0 %v304
    %400 = vmatprep.subr.bf16.mxu0 0
    %401 = vmatpush1.bf16.msra.mxu0 %v305
    %402 = vmatprep.subr.bf16.mxu0 0
    %403 = vmatpush1.bf16.msra.mxu0 %v306
    %404 = vmatprep.subr.bf16.mxu0 0
    %405 = vmatpush1.bf16.msra.mxu0 %v307
    %406 = vmatprep.subr.bf16.mxu0 0
    %407 = vmatpush1.bf16.msra.mxu0 %v308
    %408 = vmatprep.subr.bf16.mxu0 0
    %409 = vmatpush1.bf16.msra.mxu0 %v309
    %410 = vmatprep.subr.bf16.mxu0 0
    %411 = vmatpush1.bf16.msra.mxu0 %v310
    %412 = vmatprep.subr.bf16.mxu0 0
    %413 = vmatpush1.bf16.msra.mxu0 %v311
    %414 = vmatprep.subr.bf16.mxu0 0
    %415 = vmatpush1.bf16.msra.mxu0 %v312
    %416 = vmatprep.subr.bf16.mxu0 0
    %417 = vmatpush1.bf16.msra.mxu0 %v313
    %418 = vmatprep.mubr.bf16.mxu0 %v277
    %419 = vmatmul.mubr.bf16.gmra.mrb[0].mxu0 %v276
    %v420 = vpop.f32.mrb[0].mxu0
    %v421 = vadd.f32 %v381, %v420
    %v422 = vpop.f32.mrb[0].mxu0
    %v423 = vpop.f32.mrb[0].mxu0
    %v424 = vpop.f32.mrb[0].mxu0
    %425 = vdwg.mxu0
    %426 = vmatprep.subr.bf16.mxu0 0
    %427 = vmatpush1.bf16.msra.mxu0 %v314
    %428 = vmatprep.subr.bf16.mxu0 0
    %429 = vmatpush1.bf16.msra.mxu0 %v315
    %430 = vmatprep.subr.bf16.mxu0 0
    %431 = vmatpush1.bf16.msra.mxu0 %v316
    %432 = vmatprep.subr.bf16.mxu0 0
    %433 = vmatpush1.bf16.msra.mxu0 %v317
    %434 = vmatprep.subr.bf16.mxu0 0
    %435 = vmatpush1.bf16.msra.mxu0 %v318
    %436 = vmatprep.subr.bf16.mxu0 0
    %437 = vmatpush1.bf16.msra.mxu0 %v319
    %438 = vmatprep.subr.bf16.mxu0 0
    %439 = vmatpush1.bf16.msra.mxu0 %v320
    %440 = vmatprep.subr.bf16.mxu0 0
    %441 = vmatpush1.bf16.msra.mxu0 %v321
    %442 = vmatprep.subr.bf16.mxu0 0
    %443 = vmatpush1.bf16.msra.mxu0 %v322
    %444 = vmatprep.subr.bf16.mxu0 0
    %445 = vmatpush1.bf16.msra.mxu0 %v323
    %446 = vmatprep.subr.bf16.mxu0 0
    %447 = vmatpush1.bf16.msra.mxu0 %v324
    %448 = vmatprep.subr.bf16.mxu0 0
    %449 = vmatpush1.bf16.msra.mxu0 %v325
    %450 = vmatprep.subr.bf16.mxu0 0
    %451 = vmatpush1.bf16.msra.mxu0 %v326
    %452 = vmatprep.subr.bf16.mxu0 0
    %453 = vmatpush1.bf16.msra.mxu0 %v327
    %454 = vmatprep.subr.bf16.mxu0 0
    %455 = vmatpush1.bf16.msra.mxu0 %v328
    %456 = vmatprep.subr.bf16.mxu0 0
    %457 = vmatpush1.bf16.msra.mxu0 %v329
    %458 = vmatprep.mubr.bf16.mxu0 %v279
    %459 = vmatmul.mubr.bf16.gmra.mrb[0].mxu0 %v278
    %v460 = vpop.f32.mrb[0].mxu0
    %v461 = vadd.f32 %v421, %v460
    %v462 = vpop.f32.mrb[0].mxu0
    %v463 = vpop.f32.mrb[0].mxu0
    %v464 = vpop.f32.mrb[0].mxu0
    %465 = vdwg.mxu0
    %466 = vmatprep.subr.bf16.mxu0 0
    %467 = vmatpush1.bf16.msra.mxu0 %v330
    %468 = vmatprep.subr.bf16.mxu0 0
    %469 = vmatpush1.bf16.msra.mxu0 %v331
    %470 = vmatprep.subr.bf16.mxu0 0
    %471 = vmatpush1.bf16.msra.mxu0 %v332
    %472 = vmatprep.subr.bf16.mxu0 0
    %473 = vmatpush1.bf16.msra.mxu0 %v333
    %474 = vmatprep.subr.bf16.mxu0 0
    %475 = vmatpush1.bf16.msra.mxu0 %v334
    %476 = vmatprep.subr.bf16.mxu0 0
    %477 = vmatpush1.bf16.msra.mxu0 %v335
    %478 = vmatprep.subr.bf16.mxu0 0
    %479 = vmatpush1.bf16.msra.mxu0 %v336
    %480 = vmatprep.subr.bf16.mxu0 0
    %481 = vmatpush1.bf16.msra.mxu0 %v337
    %482 = vmatprep.subr.bf16.mxu0 0
    %483 = vmatpush1.bf16.msra.mxu0 %v338
    %484 = vmatprep.subr.bf16.mxu0 0
    %485 = vmatpush1.bf16.msra.mxu0 %v339
    %486 = vmatprep.subr.bf16.mxu0 0
    %487 = vmatpush1.bf16.msra.mxu0 %v340
    %488 = vmatprep.subr.bf16.mxu0 0
    %489 = vmatpush1.bf16.msra.mxu0 %v341
    %490 = vmatprep.subr.bf16.mxu0 0
    %491 = vmatpush1.bf16.msra.mxu0 %v342
    %492 = vmatprep.subr.bf16.mxu0 0
    %493 = vmatpush1.bf16.msra.mxu0 %v343
    %494 = vmatprep.subr.bf16.mxu0 0
    %495 = vmatpush1.bf16.msra.mxu0 %v344
    %496 = vmatprep.subr.bf16.mxu0 0
    %497 = vmatpush1.bf16.msra.mxu0 %v345
    %498 = vmatprep.mubr.bf16.mxu0 %v281
    %499 = vmatmul.mubr.bf16.gmra.mrb[0].mxu0 %v280
    %v500 = vpop.f32.mrb[0].mxu0
    %v501 = vadd.f32 %v461, %v500
    %v502 = vpop.f32.mrb[0].mxu0
    %v503 = vpop.f32.mrb[0].mxu0
    %v504 = vpop.f32.mrb[0].mxu0
    %505 = vdwg.mxu0
    %v506 = vmax.f32 %v501, 0.0
    %v507 = vld [vmem:[%s3] sm:$0x1]
    %v508 = vld [vmem:[%s4] sm:$0xff]
    %v509 = vld [vmem:[%s4 + $0x8] sm:$0xff]
    %v510 = vld [vmem:[%s4 + $0x10] sm:$0xff]
    %v511 = vld [vmem:[%s4 + $0x18] sm:$0xff]
    %v513 = vlaneseq
    %v514 = vshrl.u32 %v513, 7
    %v515 = vsub.s32 0, %v514
    %v516 = vrot.slane %v507, %v515
    %v518 = vmul.f32 %v506, %v516
    %v519 = vpack.c.bf16 %v518, %v518
    %v520 = vpack.c.bf16 %v509, %v508
    %v521 = vpack.c.bf16 %v511, %v510
    %vm522 = vcmask 261120
    %v524 = vsel %vm522, %v519, 0
    %526 = vmatprep.subr.bf16.mxu0 0
    %527 = vmatpush1.bf16.msra.mxu0 %v520
    %528 = vmatprep.subr.bf16.mxu0 0
    %529 = vmatpush1.bf16.msra.mxu0 %v521
    %530 = vmatprep.subr.bf16.mxu0 0
    %531 = vmatpush1.bf16.msra.mxu0 0
    %532 = vmatprep.subr.bf16.mxu0 0
    %533 = vmatpush1.bf16.msra.mxu0 0
    %534 = vmatprep.subr.bf16.mxu0 0
    %535 = vmatpush1.bf16.msra.mxu0 0
    %536 = vmatprep.subr.bf16.mxu0 0
    %537 = vmatpush1.bf16.msra.mxu0 0
    %538 = vmatprep.subr.bf16.mxu0 0
    %539 = vmatpush1.bf16.msra.mxu0 0
    %540 = vmatprep.subr.bf16.mxu0 0
    %541 = vmatpush1.bf16.msra.mxu0 0
    %542 = vmatprep.subr.bf16.mxu0 0
    %543 = vmatpush1.bf16.msra.mxu0 0
    %544 = vmatprep.subr.bf16.mxu0 0
    %545 = vmatpush1.bf16.msra.mxu0 0
    %546 = vmatprep.subr.bf16.mxu0 0
    %547 = vmatpush1.bf16.msra.mxu0 0
    %548 = vmatprep.subr.bf16.mxu0 0
    %549 = vmatpush1.bf16.msra.mxu0 0
    %550 = vmatprep.subr.bf16.mxu0 0
    %551 = vmatpush1.bf16.msra.mxu0 0
    %552 = vmatprep.subr.bf16.mxu0 0
    %553 = vmatpush1.bf16.msra.mxu0 0
    %554 = vmatprep.subr.bf16.mxu0 0
    %555 = vmatpush1.bf16.msra.mxu0 0
    %556 = vmatprep.subr.bf16.mxu0 0
    %557 = vmatpush1.bf16.msra.mxu0 0
    %558 = vmatprep.mubr.bf16.mxu0 0
    %559 = vmatmul.mubr.bf16.gmra.mrb[0].mxu0 %v524
    %v560 = vpop.f32.mrb[0].mxu0
    %v561 = vadd.f32 0.0, %v560
    %v562 = vpop.f32.mrb[0].mxu0
    %v563 = vpop.f32.mrb[0].mxu0
    %v564 = vpop.f32.mrb[0].mxu0
    %565 = vdwg.mxu0
    %v566 = vmax.f32 %v561, 0.0
    %v567 = vld [vmem:[%s5] sm:$0x1]
    %v568 = vld [vmem:[%s6] sm:$0xff]
    %v569 = vld [vmem:[%s6 + $0x8] sm:$0xff]
    %v570 = vld [vmem:[%s6 + $0x10] sm:$0xff]
    %v571 = vld [vmem:[%s6 + $0x18] sm:$0xff]
    %v573 = vlaneseq
    %v574 = vshrl.u32 %v573, 7
    %v575 = vsub.s32 0, %v574
    %v576 = vrot.slane %v567, %v575
    %v578 = vmul.f32 %v566, %v576
    %v579 = vpack.c.bf16 %v578, %v578
    %v580 = vpack.c.bf16 %v569, %v568
    %v581 = vpack.c.bf16 %v571, %v570
    %v583 = vsel %vm522, %v579, 0
    %585 = vmatprep.subr.bf16.mxu0 0
    %586 = vmatpush1.bf16.msra.mxu0 %v580
    %587 = vmatprep.subr.bf16.mxu0 0
    %588 = vmatpush1.bf16.msra.mxu0 %v581
    %589 = vmatprep.subr.bf16.mxu0 0
    %590 = vmatpush1.bf16.msra.mxu0 0
    %591 = vmatprep.subr.bf16.mxu0 0
    %592 = vmatpush1.bf16.msra.mxu0 0
    %593 = vmatprep.subr.bf16.mxu0 0
    %594 = vmatpush1.bf16.msra.mxu0 0
    %595 = vmatprep.subr.bf16.mxu0 0
    %596 = vmatpush1.bf16.msra.mxu0 0
    %597 = vmatprep.subr.bf16.mxu0 0
    %598 = vmatpush1.bf16.msra.mxu0 0
    %599 = vmatprep.subr.bf16.mxu0 0
    %600 = vmatpush1.bf16.msra.mxu0 0
    %601 = vmatprep.subr.bf16.mxu0 0
    %602 = vmatpush1.bf16.msra.mxu0 0
    %603 = vmatprep.subr.bf16.mxu0 0
    %604 = vmatpush1.bf16.msra.mxu0 0
    %605 = vmatprep.subr.bf16.mxu0 0
    %606 = vmatpush1.bf16.msra.mxu0 0
    %607 = vmatprep.subr.bf16.mxu0 0
    %608 = vmatpush1.bf16.msra.mxu0 0
    %609 = vmatprep.subr.bf16.mxu0 0
    %610 = vmatpush1.bf16.msra.mxu0 0
    %611 = vmatprep.subr.bf16.mxu0 0
    %612 = vmatpush1.bf16.msra.mxu0 0
    %613 = vmatprep.subr.bf16.mxu0 0
    %614 = vmatpush1.bf16.msra.mxu0 0
    %615 = vmatprep.subr.bf16.mxu0 0
    %616 = vmatpush1.bf16.msra.mxu0 0
    %617 = vmatprep.mubr.bf16.mxu0 0
    %618 = vmatmul.mubr.bf16.gmra.mrb[0].mxu0 %v583
    %v619 = vpop.f32.mrb[0].mxu0
    %v620 = vadd.f32 0.0, %v619
    %v621 = vpop.f32.mrb[0].mxu0
    %v622 = vpop.f32.mrb[0].mxu0
    %v623 = vpop.f32.mrb[0].mxu0
    %624 = vdwg.mxu0
    %vm625 = vcmask 58368
    %v626 = vsel %vm625, %v620, -inf
    %627 = vmax.xlane.f32.xlu0 %v626
    %v628 = vpop.xlane.xlu0 %627
    %v629 = vsub.f32 %v620, %v628
    %v630 = vmul.f32 %v629, 1.442695
    %v631 = vpow.pop %v630
    %v632 = vsel %vm625, %v631, 0.0
    %633 = vadd.xlane.f32.xlu0 %v632
    %v634 = vpop.xlane.xlu0 %633
    %v635 = vrcp.pop %v634
    %v636 = vmul.f32 %v631, %v635
    %637 = vst.msk [vmem:[#allocation2] sm:$0x3] %vm625, %v636
    // Predicated region
    $region30: #{kumaraswamy_network_forward.3} parent=1 // pred_check
      _
    $region31: #{kumaraswamy_network_forward.3} parent=1 // pred_check_branch
      %639 = sbr.rel (0) target = $region33
    $region32: #{kumaraswamy_network_forward.3} parent=1 // pred_region
      %s641 = ssub.s32 32, 32
      %642 = vsyncadd [#allocation3], %s641
      %s644 = sshll.u32 [#allocation2], 4
      %s645 = int_to_ptr.vmem [resolvable:$true] %s644
      %647 = dma.vmem_to_hbm [thread:$0]  %s645, 32, %s7, [#allocation3]
    $region33: #{kumaraswamy_network_forward.3} parent=1 // pred_fallthru
      _
    // Predicated region
    $region34: #{kumaraswamy_network_forward.3} parent=1 // pred_check
      _
    $region35: #{kumaraswamy_network_forward.3} parent=1 // pred_check_branch
      %649 = sbr.rel (0) target = $region37
    $region36: #{kumaraswamy_network_forward.3} parent=1 // pred_region
      %650 = dma.done [#allocation3], 32
    $region37: #{kumaraswamy_network_forward.3} parent=1 // pred_fallthru
      _
    %651 = vsyncpa [#allocation3], 1

</llo_original>
